<compile_context>
chip_gen: v6e
topology: v6e:2x2x1
jax: 0.10.0
libtpu: 0.0.40
codegen_flags: <defaults>
</compile_context>

<pallas_src>
import functools

import jax
import jax.numpy as jnp
from jax import lax
from jax.experimental import pallas as pl
from jax.experimental.pallas import tpu as pltpu


# ---------------- Pallas kernels ----------------

def quant_mix_kernel(w_ref, nsteps_ref, sw_ref, o_ref, acc_ref):
    """Channel-min/max fake-quantize one bit-width's weight and accumulate.

    Grid: (num_oc_tiles, num_bits) -- bits innermost (accumulation axis).

    w_ref     : VMEM (1, K, TOCQ) f32  weight slab for this bit, K = KH*KW*C,
                                       output channels on lanes (lane-dense).
    nsteps_ref: VMEM (1, 1, 1)    f32  2**bit - 1 for this bit
    sw_ref    : VMEM (1, 1, 1)    f32  softmax(alpha)[bit]
    o_ref     : VMEM (K, TOCQ)    bf16 mixed quantized weight (stored once,
                                       on the last bit)
    acc_ref   : VMEM (K, TOCQ)    f32  resident accumulator scratch
    """
    nb = pl.program_id(1)

    @pl.when(nb == 0)
    def _():
        acc_ref[...] = jnp.zeros_like(acc_ref)

    w = w_ref[0]                                          # (K, TOCQ) f32
    # Per-output-channel (per-lane) min/max over the whole (C,KH,KW) extent.
    ch_max = jnp.max(w, axis=0, keepdims=True)            # (1, TOCQ)
    ch_min = jnp.min(w, axis=0, keepdims=True)
    rng = ch_max - ch_min
    rng = jnp.where(rng == 0.0, 1.0, rng)                 # masked_fill_
    s_w = rng / nsteps_ref[0]                             # (1, TOCQ)
    # round(w / S_w) * S_w * sw[bit]  (same formulation as the reference)
    acc_ref[...] += jnp.round(w / s_w) * (s_w * sw_ref[0])

    @pl.when(nb == pl.num_programs(1) - 1)
    def _():
        o_ref[...] = acc_ref[...].astype(o_ref.dtype)


def conv_kernel(xp_ref, w_ref, o_ref, patch_ref, *, KH, KW, TOH, OW, C):
    """Direct conv2d (stride 1) for one (batch, OH-tile, OC-tile) grid cell.

    xp_ref   : VMEM (1, Hp, Wp, C) bf16  padded NHWC input (resident per batch)
    w_ref    : VMEM (K, TOC)       bf16  mixed quantized weight, K = KH*KW*C
    o_ref    : VMEM (1, TOH, OW, TOC)
    patch_ref: VMEM (TOH*OW, K)    bf16  im2col scratch, built once per
                                         (batch, oh-tile), reused over oc.
    """
    TOC = o_ref.shape[3]
    oh = pl.program_id(1)
    oc = pl.program_id(2)
    TIH = TOH + KH - 1

    # Build the im2col patch matrix only on the first oc step of this
    # (batch, oh-tile); the oc axis is "arbitrary" so every core that visits
    # this tile starts at oc == 0 and the scratch is always valid.
    @pl.when(oc == 0)
    def _():
        h0 = oh * TOH
        for kw in range(KW):
            # One W-axis (sublane) shift per kw -> KW relayouts per tile.
            xs = xp_ref[0, pl.ds(h0, TIH), kw:kw + OW, :]        # (TIH, OW, C)
            for kh in range(KH):
                col = (kh * KW + kw) * C
                patch_ref[:, col:col + C] = (
                    xs[kh:kh + TOH].reshape(TOH * OW, C))

    # Single deep MXU matmul per grid step:
    # (TOH*OW, KH*KW*C) x (KH*KW*C, TOC), f32 accumulation.
    acc = jnp.dot(patch_ref[...], w_ref[...],
                  preferred_element_type=jnp.float32)
    # Single lane-dense store per output tile.
    o_ref[0] = acc.reshape(TOH, OW, TOC).astype(o_ref.dtype)


# ---------------- helpers ----------------

def _tpu_kind():
    try:
        return jax.devices()[0].device_kind.lower()
    except Exception:
        return ""


def _vmem_limit_bytes():
    """Generation-aware scoped-VMEM request, leaving headroom below physical."""
    kind = _tpu_kind()
    if "v7" in kind:
        return 48 * 1024 * 1024            # 64 MiB physical per core - headroom
    if "v5 lite" in kind or "v5e" in kind or "v6" in kind:
        return 100 * 1024 * 1024           # 128 MiB physical
    try:
        phys = int(pltpu.get_tpu_info().vmem_capacity_bytes)
    except Exception:
        phys = 64 * 1024 * 1024            # conservative fallback
    return max(32 * 1024 * 1024,
               min(phys - 16 * 1024 * 1024, 100 * 1024 * 1024))


def _pick_toc(OC, kind):
    # v5e MXU is 4x 128x128 -> prefer 128-wide OC tiles; 256 on v6e/v7x.
    prefs = (128, 256) if ("v5 lite" in kind or "v5e" in kind) else (256, 128)
    for p in prefs:
        if OC % p == 0:
            return p
    return OC


def _pick_toh(OH, OW, K, TOC, out_itemsize):
    """Largest divisor of OH whose per-tile VMEM footprint stays modest."""
    budget = 8 * 1024 * 1024
    for t in range(OH, 0, -1):
        if OH % t:
            continue
        patch_b = t * OW * K * 2                      # bf16 im2col scratch
        acc_b = t * OW * TOC * 4                      # f32 matmul result
        out_b = 2 * t * OW * TOC * out_itemsize       # double-buffered out tile
        if patch_b + acc_b + out_b <= budget:
            return t
    return 1


# ---------------- wrapper ----------------

def mix_quant_chan_conv2d(x, weights, alpha, bits, *, padding=1,
                          compute_dtype=jnp.bfloat16, toh=None):
    """Forward pass of MixQuantChanConv2d.

    x:       (N, C, H, W)            float32 (NCHW, PyTorch convention)
    weights: (nbits, OC, C, KH, KW)  float32 (one OIHW weight per bit)
    alpha:   (nbits,)                float32 (architecture logits)
    """
    # TODO(synk): only stride=1, dilation=1, groups=1 (the defaults used by the
    # module) are implemented; other conv kwargs are not supported here.
    nbits, OC, C, KH, KW = weights.shape
    N, Cx, H, W = x.shape
    assert Cx == C and nbits == len(bits)

    kind = _tpu_kind()
    vmem_limit = _vmem_limit_bytes()

    # --- tiny per-bit scalars (softmax / quant step counts) -----------------
    sw = jax.nn.softmax(alpha.astype(jnp.float32))                 # (nbits,)
    n_steps = jnp.asarray([float((1 << b) - 1) for b in bits],
                          jnp.float32).reshape(nbits, 1, 1)
    sw3 = sw.reshape(nbits, 1, 1)

    # Lane-dense weight view: OIHW -> HWIO -> (nbits, K, OC), K = KH*KW*C.
    # (The per-channel min/max is fused into the quant kernel, so the weights
    #  cross HBM exactly once.)
    K = KH * KW * C
    w2d = jnp.transpose(weights, (0, 3, 4, 2, 1)).reshape(nbits, K, OC)

    TOC = _pick_toc(OC, kind)
    n_oc = OC // TOC
    # Quant kernel is VPU/XLU-only; keep its lane tile <=128 so large-C layers
    # (K = 9*C) still fit v5e's scoped VMEM.
    TOCQ = 128 if OC % 128 == 0 else OC
    n_oc_q = OC // TOCQ

    # --- 1) mixed quantized weight (lane-dense, accumulated over bits) -----
    mix_w = pl.pallas_call(
        quant_mix_kernel,
        out_shape=jax.ShapeDtypeStruct((K, OC), compute_dtype),
        grid=(n_oc_q, nbits),
        in_specs=[pl.BlockSpec((1, K, TOCQ), lambda i, nb: (nb, 0, i)),
                  pl.BlockSpec((1, 1, 1), lambda i, nb: (nb, 0, 0)),
                  pl.BlockSpec((1, 1, 1), lambda i, nb: (nb, 0, 0))],
        out_specs=pl.BlockSpec((K, TOCQ), lambda i, nb: (0, i)),
        scratch_shapes=[pltpu.VMEM((K, TOCQ), jnp.float32)],
        compiler_params=pltpu.CompilerParams(
            dimension_semantics=("parallel", "arbitrary"),
            vmem_limit_bytes=vmem_limit),
    )(w2d, n_steps, sw3)

    # --- 2) conv2d with the mixed weight ------------------------------------
    OH = H + 2 * padding - KH + 1
    OW = W + 2 * padding - KW + 1
    # bf16 cast folded into the layout/pad pass: halves activation HBM traffic
    # and the VMEM input block, and removes all per-tap casts in the kernel.
    x_nhwc = jnp.transpose(x, (0, 2, 3, 1)).astype(compute_dtype)
    # TODO(synk): the spatial zero-pad is still a wrapper-side XLA pass; for
    # very large activations fold it into the kernel (masked edge taps) to
    # save one HBM round trip.
    xp = jnp.pad(x_nhwc,
                 ((0, 0), (padding, padding), (padding, padding), (0, 0)))
    Hp, Wp = xp.shape[1], xp.shape[2]

    if toh is None:
        toh = _pick_toh(OH, OW, K, TOC, jnp.dtype(x.dtype).itemsize)
    assert OH % toh == 0
    n_oh = OH // toh

    # TODO(synk): for activations too large to keep a full padded image in
    # VMEM (e.g. early layers with big C*H*W), switch the input to
    # memory_space=pl.ANY + a manual halo-window DMA per OH tile.
    out_nhwc = pl.pallas_call(
        functools.partial(conv_kernel, KH=KH, KW=KW, TOH=toh, OW=OW, C=C),
        out_shape=jax.ShapeDtypeStruct((N, OH, OW, OC), x.dtype),
        grid=(N, n_oh, n_oc),
        in_specs=[
            # Full padded image; index map ignores (oh, oc) so it stays
            # resident across all inner steps of a batch element.
            pl.BlockSpec((1, Hp, Wp, C), lambda n, oh, oc: (n, 0, 0, 0)),
            # Mixed weight consumed directly in its lane-dense (K, OC) layout.
            pl.BlockSpec((K, TOC), lambda n, oh, oc: (0, oc)),
        ],
        out_specs=pl.BlockSpec((1, toh, OW, TOC),
                               lambda n, oh, oc: (n, oh, 0, oc)),
        scratch_shapes=[pltpu.VMEM((toh * OW, K), compute_dtype)],
        compiler_params=pltpu.CompilerParams(
            # oc must be "arbitrary" so the im2col scratch built at oc==0 is
            # valid for the whole sweep even under megacore partitioning.
            dimension_semantics=("parallel", "parallel", "arbitrary"),
            vmem_limit_bytes=vmem_limit),
    )(xp, mix_w)

    # TODO(synk): downstream consumers that accept NHWC can skip this final
    # transpose (a full HBM read+write of the output).
    return jnp.transpose(out_nhwc, (0, 3, 1, 2))                   # NHWC -> NCHW


# ---------------- reference (plain JAX) for verification ----------------

def _ref_forward(x, weights, alpha, bits, padding=1):
    sw = jax.nn.softmax(alpha)
    mix = jnp.zeros_like(weights[0])
    for i, bit in enumerate(bits):
        w = weights[i]
        wf = w.reshape(w.shape[0], -1)
        ch_max = wf.max(axis=1)
        ch_min = wf.min(axis=1)
        rng = ch_max - ch_min
        rng = jnp.where(rng == 0, 1.0, rng)
        s = (rng / (2 ** bit - 1)).reshape(-1, 1, 1, 1)
        q = jnp.round(w / s) * s
        mix = mix + q * sw[i]
    return lax.conv_general_dilated(
        x, mix, window_strides=(1, 1),
        padding=((padding, padding), (padding, padding)),
        dimension_numbers=('NCHW', 'OIHW', 'NCHW'))


if __name__ == "__main__":
    key = jax.random.PRNGKey(0)
    kx, kw = jax.random.split(key)

    # MixQuantChanConv2d(inplane=4, outplane=8, bits=[2,4,8],
    #                    kernel_size=3, stride=1, padding=1, bias=False)
    N, C, H, W = 2, 4, 16, 16
    OC, KH, KW = 8, 3, 3
    bits = (2, 4, 8)

    x = jax.random.normal(kx, (N, C, H, W), dtype=jnp.float32)
    weights = 0.1 * jax.random.normal(
        kw, (len(bits), OC, C, KH, KW), dtype=jnp.float32)
    alpha = jnp.full((len(bits),), 0.01, dtype=jnp.float32)   # matches .fill_(0.01)

    # toh=8 -> two OH tiles, exercising the spatially tiled conv grid.
    out = mix_quant_chan_conv2d(x, weights, alpha, bits, padding=1, toh=8)
    out = jax.block_until_ready(out)

    ref = _ref_forward(x, weights, alpha, bits, padding=1)
    assert out.shape == (N, OC, H, W)
    max_err = float(jnp.max(jnp.abs(out - ref)))
    # bf16 MXU operands (f32 accumulation) -> slightly loosened tolerance.
    assert jnp.allclose(out, ref, atol=2e-2, rtol=2e-2), f"max abs err {max_err}"

    print("KERNEL_OK")
</pallas_src>

<mosaic_0001>
module attributes {stable_mosaic.version = 11 : i64} {
  func.func @quant_mix_kernel(%arg0: i32, %arg1: i32, %arg2: memref<1x36x8xf32, #tpu.memory_space<vmem>>, %arg3: memref<1x1x1xf32, #tpu.memory_space<vmem>>, %arg4: memref<1x1x1xf32, #tpu.memory_space<vmem>>, %arg5: memref<36x8xbf16, #tpu.memory_space<vmem>>, %arg6: memref<36x8xf32, #tpu.memory_space<vmem>>) attributes {dimension_semantics = [#tpu.dimension_semantics<parallel>, #tpu.dimension_semantics<arbitrary>], iteration_bounds = array<i64: 1, 3>, scalar_prefetch = 0 : i64, scratch_operands = 1 : i64, tpu.core_type = #tpu.core_type<tc>, window_params = [{transform_indices = @transform_0, window_bounds = array<i64: 1, 36, 8>}, {transform_indices = @transform_1, window_bounds = array<i64: 1, 1, 1>}, {transform_indices = @transform_2, window_bounds = array<i64: 1, 1, 1>}, {transform_indices = @transform_3, window_bounds = array<i64: 36, 8>}]} {
    %c0_i32 = arith.constant 0 : i32
    %0 = arith.cmpi eq, %arg1, %c0_i32 : i32
    %1 = arith.extui %0 : i1 to i32
    %c0_i32_0 = arith.constant 0 : i32
    %2 = arith.cmpi ne, %1, %c0_i32_0 : i32
    scf.if %2 {
      %cst_17 = arith.constant 0.000000e+00 : f32
      %33 = vector.broadcast %cst_17 : f32 to vector<36x8xf32>
      %c0_18 = arith.constant 0 : index
      %c0_19 = arith.constant 0 : index
      %34 = vector.load %arg6[%c0_18, %c0_19] : memref<36x8xf32, #tpu.memory_space<vmem>>, vector<36x8xf32>
      tpu.vector_store %arg6[%c0_18, %c0_19], %33 {strides = array<i32>} : memref<36x8xf32, #tpu.memory_space<vmem>>, vector<36x8xf32>,
    } else {
    }
    %c0 = arith.constant 0 : index
    %c0_1 = arith.constant 0 : index
    %c0_2 = arith.constant 0 : index
    %3 = vector.load %arg2[%c0, %c0_1, %c0_2] : memref<1x36x8xf32, #tpu.memory_space<vmem>>, vector<1x36x8xf32>
    %4 = vector.shape_cast %3 : vector<1x36x8xf32> to vector<36x8xf32>
    %cst = arith.constant dense<0xFF800000> : vector<8xf32>
    %5 = vector.multi_reduction <maximumf>, %4, %cst [0] : vector<36x8xf32> to vector<8xf32>
    %6 = vector.shape_cast %5 : vector<8xf32> to vector<1x8xf32>
    %cst_3 = arith.constant dense<0x7F800000> : vector<8xf32>
    %7 = vector.multi_reduction <minimumf>, %4, %cst_3 [0] : vector<36x8xf32> to vector<8xf32>
    %8 = vector.shape_cast %7 : vector<8xf32> to vector<1x8xf32>
    %9 = arith.subf %6, %8 : vector<1x8xf32>
    %cst_4 = arith.constant 0.000000e+00 : f32
    %10 = vector.broadcast %cst_4 : f32 to vector<1x8xf32>
    %11 = arith.cmpf oeq, %9, %10 : vector<1x8xf32>
    %cst_5 = arith.constant 1.000000e+00 : f32
    %12 = vector.broadcast %cst_5 : f32 to vector<1x8xf32>
    %13 = arith.select %11, %12, %9 : vector<1x8xi1>, vector<1x8xf32>
    %c0_6 = arith.constant 0 : index
    %c0_7 = arith.constant 0 : index
    %c0_8 = arith.constant 0 : index
    %14 = vector.load %arg3[%c0_6, %c0_7, %c0_8] : memref<1x1x1xf32, #tpu.memory_space<vmem>>, vector<1x1x1xf32>
    %15 = vector.shape_cast %14 : vector<1x1x1xf32> to vector<1x1xf32>
    %16 = vector.broadcast %15 : vector<1x1xf32> to vector<1x8xf32>
    %17 = arith.divf %13, %16 : vector<1x8xf32>
    %c0_9 = arith.constant 0 : index
    %c0_10 = arith.constant 0 : index
    %18 = vector.load %arg6[%c0_9, %c0_10] : memref<36x8xf32, #tpu.memory_space<vmem>>, vector<36x8xf32>
    %19 = vector.broadcast %17 : vector<1x8xf32> to vector<36x8xf32>
    %20 = arith.divf %4, %19 : vector<36x8xf32>
    %21 = math.roundeven %20 : vector<36x8xf32>
    %c0_11 = arith.constant 0 : index
    %c0_12 = arith.constant 0 : index
    %c0_13 = arith.constant 0 : index
    %22 = vector.load %arg4[%c0_11, %c0_12, %c0_13] : memref<1x1x1xf32, #tpu.memory_space<vmem>>, vector<1x1x1xf32>
    %23 = vector.shape_cast %22 : vector<1x1x1xf32> to vector<1x1xf32>
    %24 = vector.broadcast %23 : vector<1x1xf32> to vector<1x8xf32>
    %25 = arith.mulf %17, %24 : vector<1x8xf32>
    %26 = vector.broadcast %25 : vector<1x8xf32> to vector<36x8xf32>
    %27 = arith.mulf %21, %26 : vector<36x8xf32>
    %28 = arith.addf %18, %27 : vector<36x8xf32>
    %c0_14 = arith.constant 0 : index
    %c0_15 = arith.constant 0 : index
    %29 = vector.load %arg6[%c0_14, %c0_15] : memref<36x8xf32, #tpu.memory_space<vmem>>, vector<36x8xf32>
    tpu.vector_store %arg6[%c0_14, %c0_15], %28 {strides = array<i32>} : memref<36x8xf32, #tpu.memory_space<vmem>>, vector<36x8xf32>,
    %c2_i32 = arith.constant 2 : i32
    %30 = arith.cmpi eq, %arg1, %c2_i32 : i32
    %31 = arith.extui %30 : i1 to i32
    %c0_i32_16 = arith.constant 0 : i32
    %32 = arith.cmpi ne, %31, %c0_i32_16 : i32
    scf.if %32 {
      %c0_17 = arith.constant 0 : index
      %c0_18 = arith.constant 0 : index
      %33 = vector.load %arg6[%c0_17, %c0_18] : memref<36x8xf32, #tpu.memory_space<vmem>>, vector<36x8xf32>
      %34 = arith.truncf %33 : vector<36x8xf32> to vector<36x8xbf16>
      %c0_19 = arith.constant 0 : index
      %c0_20 = arith.constant 0 : index
      %35 = vector.load %arg5[%c0_19, %c0_20] : memref<36x8xbf16, #tpu.memory_space<vmem>>, vector<36x8xbf16>
      tpu.vector_store %arg5[%c0_19, %c0_20], %34 {strides = array<i32>} : memref<36x8xbf16, #tpu.memory_space<vmem>>, vector<36x8xbf16>,
    } else {
    }
    return
  }
  func.func @transform_0(%arg0: i32, %arg1: i32) -> (i32, i32, i32) {
    %c0_i32 = arith.constant 0 : i32
    %c0_i32_0 = arith.constant 0 : i32
    return %arg1, %c0_i32, %arg0 : i32, i32, i32
  }
  func.func @transform_1(%arg0: i32, %arg1: i32) -> (i32, i32, i32) {
    %c0_i32 = arith.constant 0 : i32
    %c0_i32_0 = arith.constant 0 : i32
    %c0_i32_1 = arith.constant 0 : i32
    return %arg1, %c0_i32, %c0_i32_0 : i32, i32, i32
  }
  func.func @transform_2(%arg0: i32, %arg1: i32) -> (i32, i32, i32) {
    %c0_i32 = arith.constant 0 : i32
    %c0_i32_0 = arith.constant 0 : i32
    %c0_i32_1 = arith.constant 0 : i32
    return %arg1, %c0_i32, %c0_i32_0 : i32, i32, i32
  }
  func.func @transform_3(%arg0: i32, %arg1: i32) -> (i32, i32) {
    %c0_i32 = arith.constant 0 : i32
    %c0_i32_0 = arith.constant 0 : i32
    return %c0_i32, %arg0 : i32, i32
  }
}

</mosaic_0001>

<llo_original>
// kernel: tpu_custom_call.1
$region0: #{tpu_custom_call.1}
  #allocation0 [shape = 'u32[]', space=smem, size = 0x4, offset = 0x4, fixed_abs, tag = 'smem constant byte address 0x4 - core index']
  #allocation1 [shape = 'u32[144,128]{1,0:T(1,128)}', space=vmem, size = 0x12000, scoped, tag = 'internal scratch']
  #allocation2 [shape = 'f32[36,8]{1,0:T(8,128)}', space=vmem, size = 0x5000, scoped, tag = 'scratch operand']
  %s0 = inlined_call_operand.vmem [shape: f32[3,36,8], index: 0, kind: input, shape index: {}]
  %s1 = inlined_call_operand.vmem [shape: f32[3,1,1], index: 1, kind: input, shape index: {}]
  %s2 = inlined_call_operand.vmem [shape: f32[3,1,1], index: 2, kind: input, shape index: {}]
  %s3 = inlined_call_operand.vmem [shape: bf16[36,8], index: 3, kind: output, shape index: {}]
  %s4 = sld [smem:[#allocation0]]
  $region53: #{tpu_custom_call.1} parent=0
    _
  %s6 = ssub.s32 1, %s4
  %s7 = scalar_select 0, %s6, %s4
  loop: start=0, step=1, limit=5
  $region2: #{tpu_custom_call.1} parent=0 // loop_pre_header
    _
  $region3: #{tpu_custom_call.1} parent=0 // loop_header
    %s9 = sphi 0, %s13
    %p10 = scmp.ge.s32.totalorder %s9, 5
    %s16 = sphi 0, %s28
    %s17 = sphi 0, %s24
    %s18 = sphi 0, %s16
    %s19 = sphi 0, %s17
    %s20 = sphi 0, %s18
    %s21 = sphi 0, %s19
    %s33 = sphi 0, %s35
    %s36 = sphi 0, %s33
    %s37 = sphi 0, %s36
    %s53 = sphi 0, %s37
    %s59 = sphi 0, %s61
    %s62 = sphi 0, %s59
    %s63 = sphi 0, %s62
    %s79 = sphi 0, %s63
    %s85 = sphi 0, %s87
    %s88 = sphi 0, %s85
    %s89 = sphi 0, %s88
    %s105 = sphi 0, %s89
    %s111 = sphi 0, %s113
    %s114 = sphi 0, %s111
    %s115 = sphi 0, %s114
    %s131 = sphi 0, %s115
  $region4: #{tpu_custom_call.1} parent=0 // loop_header_branch
    %12 = sbr.rel (%p10) target = $region8
  $region5: #{tpu_custom_call.1} parent=0 // loop_body
    %s14 = ssub.s32 %s9, 1
    %s15 = ssub.s32 %s9, 2
    %s22 = sadd.s32 1, %s17
    %p23 = scmp.ge.s32.totalorder %s22, 3
    %s24 = scalar_select %p23, 0, %s22
    %s25 = sadd.s32 1, %s16
    %s26 = scalar_select %p23, %s25, %s16
    %p27 = scmp.ge.s32.totalorder %s26, 1
    %s28 = scalar_select %p27, 0, %s26
    %s29 = ssub.s32 %s17, %s24
    %s30 = ssub.s32 %s16, %s28
    %s31 = sor.u32 %s29, %s30
    %p32 = scmp.eq.s32.totalorder %s31, 0
    %s34 = sadd.s32 %s33, 1
    %s35 = scalar_select %p32, %s33, %s34
    %p38 = pneg %p32
    %p39 = scmp.eq.s32.totalorder %s9, 2
    %p40 = por %p38, %p39
    %p41 = scmp.ne.s32.totalorder %s33, %s36
    %p42 = scmp.eq.s32.totalorder %s9, 0
    %p43 = por %p41, %p42
    %p44 = scmp.ne.s32.totalorder %s33, %s36
    %p45 = scmp.eq.s32.totalorder %s14, 2
    %p46 = por %p44, %p45
    %p47 = scmp.ne.s32.totalorder %s36, %s37
    %p48 = scmp.eq.s32.totalorder %s14, 0
    %p49 = por %p47, %p48
    %p50 = scmp.ne.s32.totalorder %s36, %s37
    %p51 = scmp.eq.s32.totalorder %s15, 2
    %p52 = por %p50, %p51
    %p54 = scmp.ne.s32.totalorder %s37, %s53
    %p55 = scmp.eq.s32.totalorder %s15, 0
    %p56 = por %p54, %p55
    %s57 = ssub.s32 %s17, %s24
    %p58 = scmp.eq.s32.totalorder %s57, 0
    %s60 = sadd.s32 %s59, 1
    %s61 = scalar_select %p58, %s59, %s60
    %p64 = pneg %p58
    %p65 = scmp.eq.s32.totalorder %s9, 2
    %p66 = por %p64, %p65
    %p67 = scmp.ne.s32.totalorder %s59, %s62
    %p68 = scmp.eq.s32.totalorder %s9, 0
    %p69 = por %p67, %p68
    %p70 = scmp.ne.s32.totalorder %s59, %s62
    %p71 = scmp.eq.s32.totalorder %s14, 2
    %p72 = por %p70, %p71
    %p73 = scmp.ne.s32.totalorder %s62, %s63
    %p74 = scmp.eq.s32.totalorder %s14, 0
    %p75 = por %p73, %p74
    %p76 = scmp.ne.s32.totalorder %s62, %s63
    %p77 = scmp.eq.s32.totalorder %s15, 2
    %p78 = por %p76, %p77
    %p80 = scmp.ne.s32.totalorder %s63, %s79
    %p81 = scmp.eq.s32.totalorder %s15, 0
    %p82 = por %p80, %p81
    %s83 = ssub.s32 %s17, %s24
    %p84 = scmp.eq.s32.totalorder %s83, 0
    %s86 = sadd.s32 %s85, 1
    %s87 = scalar_select %p84, %s85, %s86
    %p90 = pneg %p84
    %p91 = scmp.eq.s32.totalorder %s9, 2
    %p92 = por %p90, %p91
    %p93 = scmp.ne.s32.totalorder %s85, %s88
    %p94 = scmp.eq.s32.totalorder %s9, 0
    %p95 = por %p93, %p94
    %p96 = scmp.ne.s32.totalorder %s85, %s88
    %p97 = scmp.eq.s32.totalorder %s14, 2
    %p98 = por %p96, %p97
    %p99 = scmp.ne.s32.totalorder %s88, %s89
    %p100 = scmp.eq.s32.totalorder %s14, 0
    %p101 = por %p99, %p100
    %p102 = scmp.ne.s32.totalorder %s88, %s89
    %p103 = scmp.eq.s32.totalorder %s15, 2
    %p104 = por %p102, %p103
    %p106 = scmp.ne.s32.totalorder %s89, %s105
    %p107 = scmp.eq.s32.totalorder %s15, 0
    %p108 = por %p106, %p107
    %s109 = ssub.s32 %s16, %s28
    %p110 = scmp.eq.s32.totalorder %s109, 0
    %s112 = sadd.s32 %s111, 1
    %s113 = scalar_select %p110, %s111, %s112
    %p116 = pneg %p110
    %p117 = scmp.eq.s32.totalorder %s9, 2
    %p118 = por %p116, %p117
    %p119 = scmp.ne.s32.totalorder %s111, %s114
    %p120 = scmp.eq.s32.totalorder %s9, 0
    %p121 = por %p119, %p120
    %p122 = scmp.ne.s32.totalorder %s111, %s114
    %p123 = scmp.eq.s32.totalorder %s14, 2
    %p124 = por %p122, %p123
    %p125 = scmp.ne.s32.totalorder %s114, %s115
    %p126 = scmp.eq.s32.totalorder %s14, 0
    %p127 = por %p125, %p126
    %p128 = scmp.ne.s32.totalorder %s114, %s115
    %p129 = scmp.eq.s32.totalorder %s15, 2
    %p130 = por %p128, %p129
    %p132 = scmp.ne.s32.totalorder %s115, %s131
    %p133 = scmp.eq.s32.totalorder %s15, 0
    %p134 = por %p132, %p133
    %p135 = scmp.le.s32.totalorder 1, %s9
    %p136 = scmp.lt.s32.totalorder %s9, 4
    %p137 = pnand %p135, %p136
    %p138 = pneg %p137
    // Predicated region
    $region9: #{tpu_custom_call.1} parent=5 // pred_check
      _
    $region10: #{tpu_custom_call.1} parent=5 // pred_check_branch
      %140 = sbr.rel (%p137) target = $region12
    $region11: #{tpu_custom_call.1} parent=5 // pred_region
      %s141 = ssub.s32 %s9, 1
    $region12: #{tpu_custom_call.1} parent=5 // pred_fallthru
      _
    %p142 = scmp.lt.s32.totalorder %s9, 3
    // Predicated region
    $region13: #{tpu_custom_call.1} parent=5 // pred_check
      %p143 = pneg %p142
    $region14: #{tpu_custom_call.1} parent=5 // pred_check_branch
      %145 = sbr.rel (%p143) target = $region16
    $region15: #{tpu_custom_call.1} parent=5 // pred_region
      // Predicated region
      $region17: #{tpu_custom_call.1} parent=15 // pred_check
        %p146 = pneg %p43
      $region18: #{tpu_custom_call.1} parent=15 // pred_check_branch
        %148 = sbr.rel (%p146) target = $region20
      $region19: #{tpu_custom_call.1} parent=15 // pred_region
        %p149 = scmp.lt.s32.totalorder %s17, 2
        %s150 = scalar_select %p149, %s17, 2
        %p151 = scmp.lt.s32.totalorder %s16, 0
        %s152 = scalar_select %p151, %s16, 0
        %s153 = smul.addr %s150, 5
        %s154 = sadd.s32 %s152, %s153
        %s155 = smul.addr %s154, 8
        %s156 = scalar_lea.vmem %s0, %s155
      $region20: #{tpu_custom_call.1} parent=15 // pred_fallthru
        _
      // Predicated region
      $region21: #{tpu_custom_call.1} parent=15 // pred_check
        %p157 = pneg %p69
      $region22: #{tpu_custom_call.1} parent=15 // pred_check_branch
        %159 = sbr.rel (%p157) target = $region24
      $region23: #{tpu_custom_call.1} parent=15 // pred_region
        %p160 = scmp.lt.s32.totalorder %s17, 2
        %s161 = scalar_select %p160, %s17, 2
        %s162 = scalar_lea.vmem %s1, %s161
      $region24: #{tpu_custom_call.1} parent=15 // pred_fallthru
        _
      // Predicated region
      $region25: #{tpu_custom_call.1} parent=15 // pred_check
        %p163 = pneg %p95
      $region26: #{tpu_custom_call.1} parent=15 // pred_check_branch
        %165 = sbr.rel (%p163) target = $region28
      $region27: #{tpu_custom_call.1} parent=15 // pred_region
        %p166 = scmp.lt.s32.totalorder %s17, 2
        %s167 = scalar_select %p166, %s17, 2
        %s168 = scalar_lea.vmem %s2, %s167
      $region28: #{tpu_custom_call.1} parent=15 // pred_fallthru
        _
    $region16: #{tpu_custom_call.1} parent=5 // pred_fallthru
      _
    %p169 = scmp.le.s32.totalorder 1, %s9
    %p170 = scmp.lt.s32.totalorder %s9, 4
    %p171 = pnand %p169, %p170
    %p172 = pneg %p171
    // Predicated region
    $region29: #{tpu_custom_call.1} parent=5 // pred_check
      _
    $region30: #{tpu_custom_call.1} parent=5 // pred_check_branch
      %174 = sbr.rel (%p171) target = $region32
    $region31: #{tpu_custom_call.1} parent=5 // pred_region
      %s175 = ssub.s32 %s9, 1
      %p176 = scmp.lt.s32.totalorder %s19, 2
      %s177 = scalar_select %p176, %s19, 2
      %p178 = scmp.lt.s32.totalorder %s18, 0
      %s179 = scalar_select %p178, %s18, 0
      %s180 = smul.addr %s177, 5
      %s181 = sadd.s32 %s179, %s180
      %s182 = smul.addr %s181, 8
      %s183 = scalar_lea.vmem %s0, %s182
      %p184 = pneg %p49
      %p185 = pneg %p46
      %p186 = scmp.lt.s32.totalorder %s19, 2
      %s187 = scalar_select %p186, %s19, 2
      %s188 = scalar_lea.vmem %s1, %s187
      %p189 = pneg %p75
      %p190 = pneg %p72
      %p191 = scmp.lt.s32.totalorder %s19, 2
      %s192 = scalar_select %p191, %s19, 2
      %s193 = scalar_lea.vmem %s2, %s192
      %p194 = pneg %p101
      %p195 = pneg %p98
      %p196 = pneg %p127
      %p197 = pneg %p124
      %p198 = scmp.lt.s32.totalorder %s18, 0
      %s199 = scalar_select %p198, %s18, 0
      %s200 = smul.addr %s199, 4
      %s201 = scalar_lea.vmem %s3, %s200
      %p202 = scmp.lt.s32.totalorder %s19, 2
      %s203 = scalar_select %p202, %s19, 2
      %p204 = scmp.lt.s32.totalorder %s18, 0
      %s205 = scalar_select %p204, %s18, 0
      %s206 = smul.addr %s203, 5
      %s207 = sadd.s32 %s205, %s206
      %s208 = smul.addr %s207, 8
      %s209 = scalar_lea.vmem %s0, %s208
      %p210 = scmp.lt.s32.totalorder %s19, 2
      %s211 = scalar_select %p210, %s19, 2
      %s212 = scalar_lea.vmem %s1, %s211
      %p213 = scmp.lt.s32.totalorder %s19, 2
      %s214 = scalar_select %p213, %s19, 2
      %s215 = scalar_lea.vmem %s2, %s214
      %p216 = scmp.lt.s32.totalorder %s18, 0
      %s217 = scalar_select %p216, %s18, 0
      %s218 = smul.addr %s217, 4
      %s219 = scalar_lea.vmem %s3, %s218
      %p220 = scmp.eq.s32.totalorder %s19, 0
      // Predicated region
      $region33: #{tpu_custom_call.1} parent=31 // pred_check
        %p221 = pneg %p220
      $region34: #{tpu_custom_call.1} parent=31 // pred_check_branch
        %223 = sbr.rel (%p221) target = $region36
      $region35: #{tpu_custom_call.1} parent=31 // pred_region
        %vm224 = vcmask 64512
        %225 = vst.msk [vmem:[#allocation2] sm:$0xff] %vm224, 0.0
        %226 = vst.msk [vmem:[#allocation2 + $0x8] sm:$0xff] %vm224, 0.0
        %227 = vst.msk [vmem:[#allocation2 + $0x10] sm:$0xff] %vm224, 0.0
        %228 = vst.msk [vmem:[#allocation2 + $0x18] sm:$0xff] %vm224, 0.0
        %vm229 = vcmask 60416
        %230 = vst.msk [vmem:[#allocation2 + $0x20] sm:$0xf] %vm229, 0.0
      $region36: #{tpu_custom_call.1} parent=31 // pred_fallthru
        _
      %v231 = vld [vmem:[%s209] sm:$0xff]
      %v232 = vld [vmem:[%s209 + $0x8] sm:$0xff]
      %v233 = vld [vmem:[%s209 + $0x10] sm:$0xff]
      %v234 = vld [vmem:[%s209 + $0x18] sm:$0xff]
      %v235 = vld [vmem:[%s209 + $0x20] sm:$0xf]
      %vm236 = vcmask 64512
      %v237 = vsel %vm236, %v231, -inf
      %v238 = vsel %vm236, %v232, -inf
      %v239 = vsel %vm236, %v233, -inf
      %v240 = vsel %vm236, %v234, -inf
      %vm241 = vcmask 60416
      %v242 = vsel %vm241, %v235, -inf
      %v243 = vmax.f32 %v237, %v242
      %v244 = vmax.f32 %v243, %v238
      %v245 = vmax.f32 %v239, %v240
      %v246 = vmax.f32 %v244, %v245
      %v247 = vrot.slane %v246, 4
      %v248 = vmax.f32 %v246, %v247
      %v249 = vrot.slane %v248, 2
      %v250 = vmax.f32 %v248, %v249
      %v251 = vrot.slane %v250, 1
      %v252 = vmax.f32 %v250, %v251
      %v253 = vsel %vm236, %v231, inf
      %v254 = vsel %vm236, %v232, inf
      %v255 = vsel %vm236, %v233, inf
      %v256 = vsel %vm236, %v234, inf
      %v257 = vsel %vm241, %v235, inf
      %v258 = vmin.f32 %v253, %v257
      %v259 = vmin.f32 %v258, %v254
      %v260 = vmin.f32 %v255, %v256
      %v261 = vmin.f32 %v259, %v260
      %v262 = vrot.slane %v261, 4
      %v263 = vmin.f32 %v261, %v262
      %v264 = vrot.slane %v263, 2
      %v265 = vmin.f32 %v263, %v264
      %v266 = vrot.slane %v265, 1
      %v267 = vmin.f32 %v265, %v266
      %v268 = vsub.f32 %v252, %v267
      %vm269 = vcmp.eq.f32.partialorder %v268, 0.0
      %v270 = vsel %vm269, 1.0, %v268
      %v271 = vld [vmem:[%s212] sm:$0x1]
      %273 = vset.pattern.permute.xlu0 0
      %274 = vperm.xlu0 %273, %v271
      %v275 = vpop.permute.xlu0 %274
      %v277 = vlaneseq
      %v278 = vshrl.u32 %v277, 7
      %v279 = vsub.s32 0, %v278
      %v280 = vrot.slane %v275, %v279
      %v281 = vrcp.pop %v280
      %v282 = vmul.f32 %v270, %v281
      %v283 = vld [vmem:[#allocation2] sm:$0xff]
      %v284 = vld [vmem:[#allocation2 + $0x8] sm:$0xff]
      %v285 = vld [vmem:[#allocation2 + $0x10] sm:$0xff]
      %v286 = vld [vmem:[#allocation2 + $0x18] sm:$0xff]
      %v287 = vld [vmem:[#allocation2 + $0x20] sm:$0xf]
      %v288 = vrcp.pop %v282
      %v289 = vmul.f32 %v231, %v288
      %v290 = vmul.f32 %v232, %v288
      %v291 = vmul.f32 %v233, %v288
      %v292 = vmul.f32 %v234, %v288
      %v293 = vmul.f32 %v235, %v288
      %v294 = vround.ne.pseudo %v289
      %v295 = vround.ne.pseudo %v290
      %v296 = vround.ne.pseudo %v291
      %v297 = vround.ne.pseudo %v292
      %v298 = vround.ne.pseudo %v293
      %v299 = vld [vmem:[%s215] sm:$0x1]
      %301 = vset.pattern.permute.xlu0 0
      %302 = vperm.xlu0 %301, %v299
      %v303 = vpop.permute.xlu0 %302
      %v305 = vlaneseq
      %v306 = vshrl.u32 %v305, 7
      %v307 = vsub.s32 0, %v306
      %v308 = vrot.slane %v303, %v307
      %v309 = vmul.f32 %v282, %v308
      %v310 = vmul.f32 %v294, %v309
      %v311 = vmul.f32 %v295, %v309
      %v312 = vmul.f32 %v296, %v309
      %v313 = vmul.f32 %v297, %v309
      %v314 = vmul.f32 %v298, %v309
      %v315 = vadd.f32 %v283, %v310
      %v316 = vadd.f32 %v284, %v311
      %v317 = vadd.f32 %v285, %v312
      %v318 = vadd.f32 %v286, %v313
      %v319 = vadd.f32 %v287, %v314
      %320 = vst.msk [vmem:[#allocation2] sm:$0xff] %vm236, %v315
      %321 = vst.msk [vmem:[#allocation2 + $0x8] sm:$0xff] %vm236, %v316
      %322 = vst.msk [vmem:[#allocation2 + $0x10] sm:$0xff] %vm236, %v317
      %323 = vst.msk [vmem:[#allocation2 + $0x18] sm:$0xff] %vm236, %v318
      %324 = vst.msk [vmem:[#allocation2 + $0x20] sm:$0xf] %vm241, %v319
      %p325 = scmp.eq.s32.totalorder %s19, 2
      // Predicated region
      $region37: #{tpu_custom_call.1} parent=31 // pred_check
        %p326 = pneg %p325
      $region38: #{tpu_custom_call.1} parent=31 // pred_check_branch
        %328 = sbr.rel (%p326) target = $region40
      $region39: #{tpu_custom_call.1} parent=31 // pred_region
        %v329 = vld [vmem:[#allocation2] sm:$0xff]
        %v330 = vld [vmem:[#allocation2 + $0x8] sm:$0xff]
        %v331 = vld [vmem:[#allocation2 + $0x10] sm:$0xff]
        %v332 = vld [vmem:[#allocation2 + $0x18] sm:$0xff]
        %v333 = vld [vmem:[#allocation2 + $0x20] sm:$0xf]
        %v334 = vpack.c.bf16 %v330, %v329
        %v335 = vpack.c.bf16 %v332, %v331
        %v336 = vpack.c.bf16 %v333, %v333
        %v340 = vunpack.c.l.b16 %v334
        %v341 = vunpack.c.h.b16 %v334
        %v342 = vunpack.c.l.b16 %v335
        %v343 = vunpack.c.h.b16 %v335
        %v344 = vunpack.c.l.b16 %v336
        %v345 = vpack.c.b16 %v340, %v340
        %v346 = vpack.c.b16 %v341, %v341
        %v347 = vpack.c.b16 %v342, %v342
        %v348 = vpack.c.b16 %v343, %v343
        %v349 = vpack.c.b16 %v344, %v344
        %355 = vst.msk [vmem:[%s219] sm:$0xf] %vm241, %v345
        %356 = vst.msk [vmem:[%s219 + $0x4] sm:$0xf] %vm241, %v346
        %357 = vst.msk [vmem:[%s219 + $0x8] sm:$0xf] %vm241, %v347
        %358 = vst.msk [vmem:[%s219 + $0xc] sm:$0xf] %vm241, %v348
        %vm359 = vcmask 58368
        %360 = vst.msk [vmem:[%s219 + $0x10] sm:$0x3] %vm359, %v349
      $region40: #{tpu_custom_call.1} parent=31 // pred_fallthru
        _
      %p361 = scmp.lt.s32.totalorder %s18, 0
      %s362 = scalar_select %p361, %s18, 0
      %s363 = smul.addr %s362, 4
      %s364 = scalar_lea.vmem %s3, %s363
      // Predicated region
      $region41: #{tpu_custom_call.1} parent=31 // pred_check
        %p365 = pneg %p124
      $region42: #{tpu_custom_call.1} parent=31 // pred_check_branch
        %367 = sbr.rel (%p365) target = $region44
      $region43: #{tpu_custom_call.1} parent=31 // pred_region
        _
      $region44: #{tpu_custom_call.1} parent=31 // pred_fallthru
        _
      // Predicated region
      $region45: #{tpu_custom_call.1} parent=31 // pred_check
        %p368 = pneg %p124
      $region46: #{tpu_custom_call.1} parent=31 // pred_check_branch
        %370 = sbr.rel (%p368) target = $region48
      $region47: #{tpu_custom_call.1} parent=31 // pred_region
        %p371 = scmp.lt.s32.totalorder %s18, 0
        %s372 = scalar_select %p371, %s18, 0
        %s373 = smul.addr %s372, 4
        %s374 = scalar_lea.vmem %s3, %s373
      $region48: #{tpu_custom_call.1} parent=31 // pred_fallthru
        _
    $region32: #{tpu_custom_call.1} parent=5 // pred_fallthru
      _
    %p375 = scmp.le.s32.totalorder 2, %s9
    // Predicated region
    $region49: #{tpu_custom_call.1} parent=5 // pred_check
      %p376 = pneg %p375
    $region50: #{tpu_custom_call.1} parent=5 // pred_check_branch
      %378 = sbr.rel (%p376) target = $region52
    $region51: #{tpu_custom_call.1} parent=5 // pred_region
      %s379 = ssub.s32 %s9, 2
    $region52: #{tpu_custom_call.1} parent=5 // pred_fallthru
      _
  $region6: #{tpu_custom_call.1} parent=0 // loop_footer
    %s13 = sadd.s32 1, %s9
  $region7: #{tpu_custom_call.1} parent=0 // loop_footer_branch
    %8 = sbr.rel target = $region3
  $region8: #{tpu_custom_call.1} parent=0 // loop_exit
    _

</llo_original>
